<compile_context>
chip_gen: v5e
topology: v5e:2x2
jax: 0.10.0
libtpu: 0.0.40
codegen_flags: <defaults>
</compile_context>

<pallas_src>
import math

import jax
import jax.numpy as jnp
import numpy as np
from jax.experimental import pallas as pl
from jax.experimental.pallas import tpu as pltpu


def _make_ohem_kernel(num_classes, thresh_val, ignore_lb, rows_tile, slab_rows,
                      hw_rows, t_inner, need_row_mask, unroll_classes):
    # thresh < 1  =>  thresh_val = -log(thresh) > 0, so pixels with loss
    # forced to 0 (ignored / padding) can never pass the `> thresh_val` test
    # and the explicit validity AND is redundant.
    strict_needs_valid = thresh_val <= 0.0

    def kernel(logits_ref, labels_ref, loss_ref, sum_ref, cnt_ref):
        # logits_ref: (C, rows_tile, 128)
        # labels_ref / loss_ref: (rows_tile, 128)
        # sum_ref / cnt_ref: (slab_rows, 128), resident per (n, t_outer) slice
        to = pl.program_id(1)
        ti = pl.program_id(2)

        lab = labels_ref[...]                                   # int32

        valid = lab != ignore_lb
        if need_row_mask:
            # Ragged last row-tile: mask rows past the real pixel range so
            # garbage logits/labels in the Pallas edge block never contribute.
            t = to * t_inner + ti
            row = jax.lax.broadcasted_iota(jnp.int32, (rows_tile, 128), 0)
            valid = jnp.logical_and(valid, t * rows_tile + row < hw_rows)

        x0 = logits_ref[0].astype(jnp.float32)
        m0 = x0
        sel0 = jnp.where(lab == 0, x0, 0.0)

        if unroll_classes:
            # Small C: static unroll.  Target-logit gather folded into the max
            # pass as a select-overwrite (saves ~C VPU adds per pixel).
            m, sel = m0, sel0
            for c in range(1, num_classes):
                xc = logits_ref[c].astype(jnp.float32)
                m = jnp.maximum(m, xc)
                sel = jnp.where(lab == c, xc, sel)
            esum = jnp.zeros_like(m)
            for c in range(num_classes):
                # TODO(synk): on v6e/v7x with large C, do exp in bf16 and
                # accumulate in f32 to relieve the single EUP slot (not v5e).
                esum = esum + jnp.exp(logits_ref[c].astype(jnp.float32) - m)
        else:
            # Large C: fori_loop bounds live ranges / code size (avoids vreg
            # spills with big tiles).
            def max_body(c, carry):
                mm, ss = carry
                xc = logits_ref[c].astype(jnp.float32)
                return jnp.maximum(mm, xc), jnp.where(lab == c, xc, ss)

            m, sel = jax.lax.fori_loop(1, num_classes, max_body, (m0, sel0),
                                       unroll=2)

            def esum_body(c, acc):
                xc = logits_ref[c].astype(jnp.float32)
                return acc + jnp.exp(xc - m)

            esum = jax.lax.fori_loop(0, num_classes, esum_body,
                                     jnp.zeros_like(m), unroll=2)

        loss = jnp.where(valid, jnp.log(esum) + m - sel, 0.0)   # (R, 128)
        loss_ref[...] = loss                                    # dense store

        if strict_needs_valid:
            # Degenerate thresh >= 1 regime: keep the explicit mask (ignored
            # pixels are excluded from the hard set, like the previous code).
            gt = jnp.logical_and(valid, loss > thresh_val)
        else:
            gt = loss > thresh_val

        gt_loss = jnp.where(gt, loss, 0.0)
        gt_cnt = gt.astype(jnp.float32)
        if slab_rows != rows_tile:
            # Fold per-tile partials to a fixed (8, 128) slab (vreg adds only;
            # keeps resident accumulator VMEM independent of rows_tile).
            gt_loss = gt_loss.reshape(rows_tile // slab_rows, slab_rows,
                                      128).sum(axis=0)
            gt_cnt = gt_cnt.reshape(rows_tile // slab_rows, slab_rows,
                                    128).sum(axis=0)

        @pl.when(ti == 0)
        def _():
            sum_ref[...] = jnp.zeros_like(sum_ref)
            cnt_ref[...] = jnp.zeros_like(cnt_ref)

        sum_ref[...] += gt_loss
        cnt_ref[...] += gt_cnt

    return kernel


def ohem_ce_loss(logits, labels, *, thresh=0.7, n_min=16, ignore_lb=255,
                 rows_per_tile=None):
    """Forward pass of OhemCELoss.

    logits: (N, C, H, W) float32 or bfloat16 (NCHW, same as PyTorch; bf16
            input halves HBM traffic — the kernel upcasts per class).
    labels: (N, H, W) int32 (values in [0, C) or == ignore_lb)
    returns: scalar float32 loss
    """
    N, C, H, W = logits.shape
    HW = H * W
    thresh_val = float(-math.log(thresh))

    hw_rows = -(-HW // 128)                 # ceil(HW / 128)
    HW128 = hw_rows * 128

    # Free reshapes only.  A pad happens ONLY when HW is not a multiple of 128
    # (rare for segmentation shapes); row-tile alignment is handled via ragged
    # Pallas edge blocks + in-kernel masking, never via a full-tensor pad.
    logits3 = logits.reshape(N, C, HW)
    labels2 = labels.reshape(N, HW).astype(jnp.int32)
    if HW128 != HW:
        # TODO(synk): a fully pad-free path for HW % 128 != 0 would need a
        # lane-ragged logits layout; this pad only triggers for odd HW.
        logits3 = jnp.pad(logits3, ((0, 0), (0, 0), (0, HW128 - HW)))
        labels2 = jnp.pad(labels2, ((0, 0), (0, HW128 - HW)),
                          constant_values=ignore_lb)
    logits4 = logits3.reshape(N, C, hw_rows, 128)
    labels3 = labels2.reshape(N, hw_rows, 128)

    # Tile sizing: HBM-bound kernel, so pick the biggest pixel tile that fits
    # a portable (v7x-safe) scoped-VMEM budget with double buffering.
    vmem_limit = 32 * 1024 * 1024
    budget = 24 * 1024 * 1024
    itemsize = jnp.dtype(logits.dtype).itemsize
    # double-buffered logits (C planes) + labels (i32) + per-pixel loss (f32)
    bytes_per_row = 2 * 128 * (C * itemsize + 4 + 4)
    rows_cap = max(8, budget // bytes_per_row)
    if rows_per_tile is None:
        rows_per_tile = 512
    rows_tile = int(min(rows_per_tile, rows_cap, 512))
    rows_tile = max(8, (rows_tile // 8) * 8)
    if hw_rows <= rows_tile:
        rows_tile = hw_rows                  # tiny inputs: full-extent block

    num_tiles = -(-hw_rows // rows_tile)
    need_row_mask = (num_tiles * rows_tile) != hw_rows

    # v7x megacore: if the batch axis alone can't feed 2 TensorCores, expose a
    # second "parallel" axis by splitting the pixel-tile loop.  Each
    # (n, t_outer) slice owns a private accumulator block -> race-free.
    if N >= 4 or num_tiles == 1:
        t_outer = 1
    else:
        t_outer = max(d for d in range(1, min(8, num_tiles) + 1)
                      if num_tiles % d == 0)
    t_inner = num_tiles // t_outer

    slab_rows = 8 if rows_tile % 8 == 0 else rows_tile

    kernel = _make_ohem_kernel(C, thresh_val, ignore_lb, rows_tile, slab_rows,
                               hw_rows, t_inner, need_row_mask,
                               unroll_classes=C < 32)

    loss_pp, sum_part, cnt_part = pl.pallas_call(
        kernel,
        out_shape=(
            # per-pixel loss, dense (rows, 128) layout
            jax.ShapeDtypeStruct((N, hw_rows, 128), jnp.float32),
            # per-(batch, t_outer) per-lane partial sums / counts of hard px
            jax.ShapeDtypeStruct((N, t_outer, slab_rows, 128), jnp.float32),
            jax.ShapeDtypeStruct((N, t_outer, slab_rows, 128), jnp.float32),
        ),
        grid_spec=pltpu.PrefetchScalarGridSpec(
            num_scalar_prefetch=0,
            grid=(N, t_outer, t_inner),
            in_specs=[
                pl.BlockSpec((None, C, rows_tile, 128),
                             lambda n, to, ti: (n, 0, to * t_inner + ti, 0)),
                pl.BlockSpec((None, rows_tile, 128),
                             lambda n, to, ti: (n, to * t_inner + ti, 0)),
            ],
            out_specs=[
                pl.BlockSpec((None, rows_tile, 128),
                             lambda n, to, ti: (n, to * t_inner + ti, 0)),
                pl.BlockSpec((None, None, slab_rows, 128),
                             lambda n, to, ti: (n, to, 0, 0)),
                pl.BlockSpec((None, None, slab_rows, 128),
                             lambda n, to, ti: (n, to, 0, 0)),
            ],
        ),
        compiler_params=pltpu.CompilerParams(
            dimension_semantics=("parallel", "parallel", "arbitrary"),
            vmem_limit_bytes=vmem_limit),
    )(logits4, labels3)

    s = jnp.sum(sum_part)          # sum of losses > thresh
    c = jnp.sum(cnt_part)          # count of losses > thresh (f32; exact to 2^24)

    def hard_branch(_):
        return s / c

    def topk_branch(_):
        # Slice/flatten only on the fallback path: saves an extra HBM copy of
        # the per-pixel losses on the common hard-branch path.
        lf = loss_pp.reshape(N, HW128)[:, :HW].reshape(-1)
        topk_vals, _ = jax.lax.top_k(lf, n_min)
        return jnp.mean(topk_vals)

    # sorted_desc(loss)[n_min] > thresh  <=>  count(loss > thresh) > n_min
    return jax.lax.cond(c > n_min, hard_branch, topk_branch, operand=None)


def _reference_numpy(logits, labels, thresh, n_min, ignore_lb=255):
    lg = np.asarray(logits, dtype=np.float64)
    lb = np.asarray(labels)
    m = lg.max(axis=1, keepdims=True)
    lse = np.log(np.exp(lg - m).sum(axis=1, keepdims=True)) + m  # (N,1,H,W)
    valid = lb != ignore_lb
    safe = np.where(valid, lb, 0)
    sel = np.take_along_axis(lg, safe[:, None], axis=1)[:, 0]
    loss = np.where(valid, lse[:, 0] - sel, 0.0).reshape(-1)
    loss_s = np.sort(loss)[::-1]
    th = -np.log(thresh)
    if loss_s[n_min] > th:
        kept = loss_s[loss_s > th]
    else:
        kept = loss_s[:n_min]
    return float(kept.mean())


if __name__ == "__main__":
    key = jax.random.PRNGKey(0)
    k1, k2, k3 = jax.random.split(key, 3)

    N, C, H, W = 2, 4, 16, 16
    logits = jax.random.normal(k1, (N, C, H, W), dtype=jnp.float32)
    labels = jax.random.randint(k2, (N, H, W), 0, C, dtype=jnp.int32)
    ignore_mask = jax.random.uniform(k3, (N, H, W)) < 0.1
    labels = jnp.where(ignore_mask, 255, labels)

    thresh = 0.7
    n_min = (N * H * W) // 16  # 32, mirrors the usual OhemCELoss setup

    out = ohem_ce_loss(logits, labels, thresh=thresh, n_min=n_min,
                       ignore_lb=255)
    out = jax.block_until_ready(out)

    ref = _reference_numpy(logits, labels, thresh, n_min, ignore_lb=255)
    assert abs(float(out) - ref) < 1e-4, (float(out), ref)

    print("KERNEL_OK")
</pallas_src>

<mosaic_0001>
module attributes {stable_mosaic.version = 11 : i64} {
  func.func @kernel(%arg0: i32, %arg1: i32, %arg2: i32, %arg3: memref<1x4x2x128xf32, #tpu.memory_space<vmem>>, %arg4: memref<1x2x128xi32, #tpu.memory_space<vmem>>, %arg5: memref<1x2x128xf32, #tpu.memory_space<vmem>>, %arg6: memref<1x1x2x128xf32, #tpu.memory_space<vmem>>, %arg7: memref<1x1x2x128xf32, #tpu.memory_space<vmem>>) attributes {dimension_semantics = [#tpu.dimension_semantics<parallel>, #tpu.dimension_semantics<parallel>, #tpu.dimension_semantics<arbitrary>], iteration_bounds = array<i64: 2, 1, 1>, scalar_prefetch = 0 : i64, scratch_operands = 0 : i64, tpu.core_type = #tpu.core_type<tc>, window_params = [{transform_indices = @transform_0, window_bounds = array<i64: 1, 4, 2, 128>}, {transform_indices = @transform_1, window_bounds = array<i64: 1, 2, 128>}, {transform_indices = @transform_2, window_bounds = array<i64: 1, 2, 128>}, {transform_indices = @transform_3, window_bounds = array<i64: 1, 1, 2, 128>}, {transform_indices = @transform_4, window_bounds = array<i64: 1, 1, 2, 128>}]} {
    %c0 = arith.constant 0 : index
    %c0_0 = arith.constant 0 : index
    %c0_1 = arith.constant 0 : index
    %0 = vector.load %arg4[%c0, %c0_0, %c0_1] : memref<1x2x128xi32, #tpu.memory_space<vmem>>, vector<1x2x128xi32>
    %1 = vector.shape_cast %0 : vector<1x2x128xi32> to vector<2x128xi32>
    %c255_i32 = arith.constant 255 : i32
    %2 = vector.broadcast %c255_i32 : i32 to vector<2x128xi32>
    %3 = arith.cmpi ne, %1, %2 : vector<2x128xi32>
    %c0_2 = arith.constant 0 : index
    %c0_3 = arith.constant 0 : index
    %c0_4 = arith.constant 0 : index
    %c0_5 = arith.constant 0 : index
    %4 = vector.load %arg3[%c0_2, %c0_3, %c0_4, %c0_5] : memref<1x4x2x128xf32, #tpu.memory_space<vmem>>, vector<1x1x2x128xf32>
    %5 = vector.shape_cast %4 : vector<1x1x2x128xf32> to vector<2x128xf32>
    %c0_i32 = arith.constant 0 : i32
    %6 = vector.broadcast %c0_i32 : i32 to vector<2x128xi32>
    %7 = arith.cmpi eq, %1, %6 : vector<2x128xi32>
    %cst = arith.constant 0.000000e+00 : f32
    %8 = vector.broadcast %cst : f32 to vector<2x128xf32>
    %9 = arith.select %7, %5, %8 : vector<2x128xi1>, vector<2x128xf32>
    %c0_6 = arith.constant 0 : index
    %c1 = arith.constant 1 : index
    %c0_7 = arith.constant 0 : index
    %c0_8 = arith.constant 0 : index
    %10 = vector.load %arg3[%c0_6, %c1, %c0_7, %c0_8] : memref<1x4x2x128xf32, #tpu.memory_space<vmem>>, vector<1x1x2x128xf32>
    %11 = vector.shape_cast %10 : vector<1x1x2x128xf32> to vector<2x128xf32>
    %12 = arith.maximumf %5, %11 : vector<2x128xf32>
    %c1_i32 = arith.constant 1 : i32
    %13 = vector.broadcast %c1_i32 : i32 to vector<2x128xi32>
    %14 = arith.cmpi eq, %1, %13 : vector<2x128xi32>
    %15 = arith.select %14, %11, %9 : vector<2x128xi1>, vector<2x128xf32>
    %c0_9 = arith.constant 0 : index
    %c2 = arith.constant 2 : index
    %c0_10 = arith.constant 0 : index
    %c0_11 = arith.constant 0 : index
    %16 = vector.load %arg3[%c0_9, %c2, %c0_10, %c0_11] : memref<1x4x2x128xf32, #tpu.memory_space<vmem>>, vector<1x1x2x128xf32>
    %17 = vector.shape_cast %16 : vector<1x1x2x128xf32> to vector<2x128xf32>
    %18 = arith.maximumf %12, %17 : vector<2x128xf32>
    %c2_i32 = arith.constant 2 : i32
    %19 = vector.broadcast %c2_i32 : i32 to vector<2x128xi32>
    %20 = arith.cmpi eq, %1, %19 : vector<2x128xi32>
    %21 = arith.select %20, %17, %15 : vector<2x128xi1>, vector<2x128xf32>
    %c0_12 = arith.constant 0 : index
    %c3 = arith.constant 3 : index
    %c0_13 = arith.constant 0 : index
    %c0_14 = arith.constant 0 : index
    %22 = vector.load %arg3[%c0_12, %c3, %c0_13, %c0_14] : memref<1x4x2x128xf32, #tpu.memory_space<vmem>>, vector<1x1x2x128xf32>
    %23 = vector.shape_cast %22 : vector<1x1x2x128xf32> to vector<2x128xf32>
    %24 = arith.maximumf %18, %23 : vector<2x128xf32>
    %c3_i32 = arith.constant 3 : i32
    %25 = vector.broadcast %c3_i32 : i32 to vector<2x128xi32>
    %26 = arith.cmpi eq, %1, %25 : vector<2x128xi32>
    %27 = arith.select %26, %23, %21 : vector<2x128xi1>, vector<2x128xf32>
    %cst_15 = arith.constant 0.000000e+00 : f32
    %28 = vector.broadcast %cst_15 : f32 to vector<2x128xf32>
    %c0_16 = arith.constant 0 : index
    %c0_17 = arith.constant 0 : index
    %c0_18 = arith.constant 0 : index
    %c0_19 = arith.constant 0 : index
    %29 = vector.load %arg3[%c0_16, %c0_17, %c0_18, %c0_19] : memref<1x4x2x128xf32, #tpu.memory_space<vmem>>, vector<1x1x2x128xf32>
    %30 = vector.shape_cast %29 : vector<1x1x2x128xf32> to vector<2x128xf32>
    %31 = arith.subf %30, %24 : vector<2x128xf32>
    %32 = math.exp %31 : vector<2x128xf32>
    %33 = arith.addf %28, %32 : vector<2x128xf32>
    %c0_20 = arith.constant 0 : index
    %c1_21 = arith.constant 1 : index
    %c0_22 = arith.constant 0 : index
    %c0_23 = arith.constant 0 : index
    %34 = vector.load %arg3[%c0_20, %c1_21, %c0_22, %c0_23] : memref<1x4x2x128xf32, #tpu.memory_space<vmem>>, vector<1x1x2x128xf32>
    %35 = vector.shape_cast %34 : vector<1x1x2x128xf32> to vector<2x128xf32>
    %36 = arith.subf %35, %24 : vector<2x128xf32>
    %37 = math.exp %36 : vector<2x128xf32>
    %38 = arith.addf %33, %37 : vector<2x128xf32>
    %c0_24 = arith.constant 0 : index
    %c2_25 = arith.constant 2 : index
    %c0_26 = arith.constant 0 : index
    %c0_27 = arith.constant 0 : index
    %39 = vector.load %arg3[%c0_24, %c2_25, %c0_26, %c0_27] : memref<1x4x2x128xf32, #tpu.memory_space<vmem>>, vector<1x1x2x128xf32>
    %40 = vector.shape_cast %39 : vector<1x1x2x128xf32> to vector<2x128xf32>
    %41 = arith.subf %40, %24 : vector<2x128xf32>
    %42 = math.exp %41 : vector<2x128xf32>
    %43 = arith.addf %38, %42 : vector<2x128xf32>
    %c0_28 = arith.constant 0 : index
    %c3_29 = arith.constant 3 : index
    %c0_30 = arith.constant 0 : index
    %c0_31 = arith.constant 0 : index
    %44 = vector.load %arg3[%c0_28, %c3_29, %c0_30, %c0_31] : memref<1x4x2x128xf32, #tpu.memory_space<vmem>>, vector<1x1x2x128xf32>
    %45 = vector.shape_cast %44 : vector<1x1x2x128xf32> to vector<2x128xf32>
    %46 = arith.subf %45, %24 : vector<2x128xf32>
    %47 = math.exp %46 : vector<2x128xf32>
    %48 = arith.addf %43, %47 : vector<2x128xf32>
    %49 = math.log %48 : vector<2x128xf32>
    %50 = arith.addf %49, %24 : vector<2x128xf32>
    %51 = arith.subf %50, %27 : vector<2x128xf32>
    %cst_32 = arith.constant 0.000000e+00 : f32
    %52 = vector.broadcast %cst_32 : f32 to vector<2x128xf32>
    %53 = arith.select %3, %51, %52 : vector<2x128xi1>, vector<2x128xf32>
    %c0_33 = arith.constant 0 : index
    %c0_34 = arith.constant 0 : index
    %c0_35 = arith.constant 0 : index
    %54 = vector.load %arg5[%c0_33, %c0_34, %c0_35] : memref<1x2x128xf32, #tpu.memory_space<vmem>>, vector<1x2x128xf32>
    %55 = vector.shape_cast %54 : vector<1x2x128xf32> to vector<2x128xf32>
    %56 = vector.shape_cast %53 : vector<2x128xf32> to vector<1x2x128xf32>
    tpu.vector_store %arg5[%c0_33, %c0_34, %c0_35], %56 {strides = array<i32>} : memref<1x2x128xf32, #tpu.memory_space<vmem>>, vector<1x2x128xf32>,
    %cst_36 = arith.constant 0.356674939 : f32
    %57 = vector.broadcast %cst_36 : f32 to vector<2x128xf32>
    %58 = arith.cmpf ogt, %53, %57 : vector<2x128xf32>
    %cst_37 = arith.constant 0.000000e+00 : f32
    %59 = vector.broadcast %cst_37 : f32 to vector<2x128xf32>
    %60 = arith.select %58, %53, %59 : vector<2x128xi1>, vector<2x128xf32>
    %61 = arith.extui %58 : vector<2x128xi1> to vector<2x128xi32>
    %62 = arith.sitofp %61 : vector<2x128xi32> to vector<2x128xf32>
    %c0_i32_38 = arith.constant 0 : i32
    %63 = arith.cmpi eq, %arg2, %c0_i32_38 : i32
    %64 = arith.extui %63 : i1 to i32
    %c0_i32_39 = arith.constant 0 : i32
    %65 = arith.cmpi ne, %64, %c0_i32_39 : i32
    scf.if %65 {
      %cst_56 = arith.constant 0.000000e+00 : f32
      %78 = vector.broadcast %cst_56 : f32 to vector<2x128xf32>
      %c0_57 = arith.constant 0 : index
      %c0_58 = arith.constant 0 : index
      %c0_59 = arith.constant 0 : index
      %c0_60 = arith.constant 0 : index
      %79 = vector.load %arg6[%c0_57, %c0_58, %c0_59, %c0_60] : memref<1x1x2x128xf32, #tpu.memory_space<vmem>>, vector<1x1x2x128xf32>
      %80 = vector.shape_cast %79 : vector<1x1x2x128xf32> to vector<2x128xf32>
      %81 = vector.shape_cast %78 : vector<2x128xf32> to vector<1x1x2x128xf32>
      tpu.vector_store %arg6[%c0_57, %c0_58, %c0_59, %c0_60], %81 {strides = array<i32>} : memref<1x1x2x128xf32, #tpu.memory_space<vmem>>, vector<1x1x2x128xf32>,
      %cst_61 = arith.constant 0.000000e+00 : f32
      %82 = vector.broadcast %cst_61 : f32 to vector<2x128xf32>
      %c0_62 = arith.constant 0 : index
      %c0_63 = arith.constant 0 : index
      %c0_64 = arith.constant 0 : index
      %c0_65 = arith.constant 0 : index
      %83 = vector.load %arg7[%c0_62, %c0_63, %c0_64, %c0_65] : memref<1x1x2x128xf32, #tpu.memory_space<vmem>>, vector<1x1x2x128xf32>
      %84 = vector.shape_cast %83 : vector<1x1x2x128xf32> to vector<2x128xf32>
      %85 = vector.shape_cast %82 : vector<2x128xf32> to vector<1x1x2x128xf32>
      tpu.vector_store %arg7[%c0_62, %c0_63, %c0_64, %c0_65], %85 {strides = array<i32>} : memref<1x1x2x128xf32, #tpu.memory_space<vmem>>, vector<1x1x2x128xf32>,
    } else {
    }
    %c0_40 = arith.constant 0 : index
    %c0_41 = arith.constant 0 : index
    %c0_42 = arith.constant 0 : index
    %c0_43 = arith.constant 0 : index
    %66 = vector.load %arg6[%c0_40, %c0_41, %c0_42, %c0_43] : memref<1x1x2x128xf32, #tpu.memory_space<vmem>>, vector<1x1x2x128xf32>
    %67 = vector.shape_cast %66 : vector<1x1x2x128xf32> to vector<2x128xf32>
    %68 = arith.addf %67, %60 : vector<2x128xf32>
    %c0_44 = arith.constant 0 : index
    %c0_45 = arith.constant 0 : index
    %c0_46 = arith.constant 0 : index
    %c0_47 = arith.constant 0 : index
    %69 = vector.load %arg6[%c0_44, %c0_45, %c0_46, %c0_47] : memref<1x1x2x128xf32, #tpu.memory_space<vmem>>, vector<1x1x2x128xf32>
    %70 = vector.shape_cast %69 : vector<1x1x2x128xf32> to vector<2x128xf32>
    %71 = vector.shape_cast %68 : vector<2x128xf32> to vector<1x1x2x128xf32>
    tpu.vector_store %arg6[%c0_44, %c0_45, %c0_46, %c0_47], %71 {strides = array<i32>} : memref<1x1x2x128xf32, #tpu.memory_space<vmem>>, vector<1x1x2x128xf32>,
    %c0_48 = arith.constant 0 : index
    %c0_49 = arith.constant 0 : index
    %c0_50 = arith.constant 0 : index
    %c0_51 = arith.constant 0 : index
    %72 = vector.load %arg7[%c0_48, %c0_49, %c0_50, %c0_51] : memref<1x1x2x128xf32, #tpu.memory_space<vmem>>, vector<1x1x2x128xf32>
    %73 = vector.shape_cast %72 : vector<1x1x2x128xf32> to vector<2x128xf32>
    %74 = arith.addf %73, %62 : vector<2x128xf32>
    %c0_52 = arith.constant 0 : index
    %c0_53 = arith.constant 0 : index
    %c0_54 = arith.constant 0 : index
    %c0_55 = arith.constant 0 : index
    %75 = vector.load %arg7[%c0_52, %c0_53, %c0_54, %c0_55] : memref<1x1x2x128xf32, #tpu.memory_space<vmem>>, vector<1x1x2x128xf32>
    %76 = vector.shape_cast %75 : vector<1x1x2x128xf32> to vector<2x128xf32>
    %77 = vector.shape_cast %74 : vector<2x128xf32> to vector<1x1x2x128xf32>
    tpu.vector_store %arg7[%c0_52, %c0_53, %c0_54, %c0_55], %77 {strides = array<i32>} : memref<1x1x2x128xf32, #tpu.memory_space<vmem>>, vector<1x1x2x128xf32>,
    return
  }
  func.func @transform_0(%arg0: i32, %arg1: i32, %arg2: i32) -> (i32, i32, i32, i32) {
    %c1_i32 = arith.constant 1 : i32
    %0 = arith.muli %arg1, %c1_i32 : i32
    %1 = arith.addi %0, %arg2 : i32
    %c0_i32 = arith.constant 0 : i32
    %c0_i32_0 = arith.constant 0 : i32
    %c0_i32_1 = arith.constant 0 : i32
    return %arg0, %c0_i32, %1, %c0_i32_0 : i32, i32, i32, i32
  }
  func.func @transform_1(%arg0: i32, %arg1: i32, %arg2: i32) -> (i32, i32, i32) {
    %c1_i32 = arith.constant 1 : i32
    %0 = arith.muli %arg1, %c1_i32 : i32
    %1 = arith.addi %0, %arg2 : i32
    %c0_i32 = arith.constant 0 : i32
    %c0_i32_0 = arith.constant 0 : i32
    return %arg0, %1, %c0_i32 : i32, i32, i32
  }
  func.func @transform_2(%arg0: i32, %arg1: i32, %arg2: i32) -> (i32, i32, i32) {
    %c1_i32 = arith.constant 1 : i32
    %0 = arith.muli %arg1, %c1_i32 : i32
    %1 = arith.addi %0, %arg2 : i32
    %c0_i32 = arith.constant 0 : i32
    %c0_i32_0 = arith.constant 0 : i32
    return %arg0, %1, %c0_i32 : i32, i32, i32
  }
  func.func @transform_3(%arg0: i32, %arg1: i32, %arg2: i32) -> (i32, i32, i32, i32) {
    %c0_i32 = arith.constant 0 : i32
    %c0_i32_0 = arith.constant 0 : i32
    %c0_i32_1 = arith.constant 0 : i32
    return %arg0, %arg1, %c0_i32, %c0_i32_0 : i32, i32, i32, i32
  }
  func.func @transform_4(%arg0: i32, %arg1: i32, %arg2: i32) -> (i32, i32, i32, i32) {
    %c0_i32 = arith.constant 0 : i32
    %c0_i32_0 = arith.constant 0 : i32
    %c0_i32_1 = arith.constant 0 : i32
    return %arg0, %arg1, %c0_i32, %c0_i32_0 : i32, i32, i32, i32
  }
}

</mosaic_0001>

<llo_original>
// kernel: tpu_custom_call.1
$region0: #{tpu_custom_call.1}
  #allocation0 [shape = 'u32[]', space=smem, size = 0x4, offset = 0x4, fixed_abs, tag = 'smem constant byte address 0x4 - core index']
  #allocation1 [shape = 'u32[72,128]{1,0:T(1,128)}', space=vmem, size = 0x9000, scoped, tag = 'internal scratch']
  %s0 = inlined_call_operand.hbm [shape: f32[2,4,2,128], index: 0, kind: input, shape index: {}]
  %s1 = inlined_call_operand.hbm [shape: s32[2,2,128], index: 1, kind: input, shape index: {}]
  %s2 = inlined_call_operand.hbm [shape: f32[2,2,128], index: 2, kind: output, shape index: {0}]
  %s3 = inlined_call_operand.hbm [shape: f32[2,1,2,128], index: 3, kind: output, shape index: {1}]
  %s4 = inlined_call_operand.hbm [shape: f32[2,1,2,128], index: 4, kind: output, shape index: {2}]
  %5 = xla_tuple %s2, %s3, %s4
  %s6 = sld [smem:[#allocation0]]
  $region69: #{tpu_custom_call.1} parent=0
    _
  %s8 = ssub.s32 1, %s6
  %s9 = scalar_select 0, %s8, %s6
  $region1: #{tpu_custom_call.1} parent=0
    #allocation2 [shape = 'u8[8192]{0}', space=vmem, size = 0x2000, scoped, tag = 'input window, operand 0']
    #allocation3 [shape = 's32[2]{0}', space=sflag, size = 0x8, scoped, tag = 'scoped memory for tpu_custom_call.1']
    #allocation4 [shape = 's32[2]{0}', space=sflag, size = 0x8, scoped, tag = 'scoped memory for tpu_custom_call.1']
    #allocation5 [shape = 'u8[2048]{0}', space=vmem, size = 0x800, scoped, tag = 'input window, operand 1']
    #allocation6 [shape = 's32[2]{0}', space=sflag, size = 0x8, scoped, tag = 'scoped memory for tpu_custom_call.1']
    #allocation7 [shape = 'u8[2048]{0}', space=vmem, size = 0x800, scoped, tag = 'output window, operand 0']
    #allocation8 [shape = 'u8[2048]{0}', space=vmem, size = 0x800, scoped, tag = 'output window, operand 1']
    #allocation9 [shape = 's32[2]{0}', space=sflag, size = 0x8, scoped, tag = 'scoped memory for tpu_custom_call.1']
    #allocation10 [shape = 'u8[2048]{0}', space=vmem, size = 0x800, scoped, tag = 'output window, operand 2']
    %10 = vsyncpa [#allocation3], 0
    %s11 = scalar_lea.sflag [#allocation3], 1
    %12 = vsyncpa %s11, 0
    %13 = vsyncpa [#allocation6], 0
    %s14 = scalar_lea.sflag [#allocation6], 1
    %15 = vsyncpa %s14, 0
    %16 = vsyncpa [#allocation4], 0
    %s17 = scalar_lea.sflag [#allocation4], 1
    %18 = vsyncpa %s17, 0
    %19 = vsyncpa [#allocation9], 0
    %s20 = scalar_lea.sflag [#allocation9], 1
    %21 = vsyncpa %s20, 0
    loop: start=0, step=1, limit=4
    $region2: #{tpu_custom_call.1} parent=1 // loop_pre_header
      _
    $region3: #{tpu_custom_call.1} parent=1 // loop_header
      %s23 = sphi 0, %s27
      %p24 = scmp.ge.s32.totalorder %s23, 4
      %s30 = sphi 0, %s49
      %s31 = sphi 0, %s45
      %s32 = sphi 0, %s41
      %s33 = sphi 0, %s30
      %s34 = sphi 0, %s31
      %s35 = sphi 0, %s32
      %s36 = sphi 0, %s33
      %s37 = sphi 0, %s34
      %s38 = sphi 0, %s35
      %s56 = sphi 0, %s58
      %s59 = sphi 0, %s56
      %s60 = sphi 0, %s59
      %s76 = sphi 0, %s60
      %s86 = sphi 0, %s88
      %s89 = sphi 0, %s86
      %s90 = sphi 0, %s89
      %s106 = sphi 0, %s90
      %s116 = sphi 0, %s118
      %s119 = sphi 0, %s116
      %s120 = sphi 0, %s119
      %s136 = sphi 0, %s120
      %s144 = sphi 0, %s146
      %s147 = sphi 0, %s144
      %s148 = sphi 0, %s147
      %s164 = sphi 0, %s148
      %s172 = sphi 0, %s174
      %s175 = sphi 0, %s172
      %s176 = sphi 0, %s175
      %s192 = sphi 0, %s176
    $region4: #{tpu_custom_call.1} parent=1 // loop_header_branch
      %26 = sbr.rel (%p24) target = $region8
    $region5: #{tpu_custom_call.1} parent=1 // loop_body
      %s28 = ssub.s32 %s23, 1
      %s29 = ssub.s32 %s23, 2
      %s39 = sadd.s32 1, %s32
      %p40 = scmp.ge.s32.totalorder %s39, 1
      %s41 = scalar_select %p40, 0, %s39
      %s42 = sadd.s32 1, %s31
      %s43 = scalar_select %p40, %s42, %s31
      %p44 = scmp.ge.s32.totalorder %s43, 1
      %s45 = scalar_select %p44, 0, %s43
      %s46 = sadd.s32 1, %s30
      %s47 = scalar_select %p44, %s46, %s30
      %p48 = scmp.ge.s32.totalorder %s47, 2
      %s49 = scalar_select %p48, 0, %s47
      %s50 = sadd.s32 %s31, %s32
      %s51 = sadd.s32 %s45, %s41
      %s52 = ssub.s32 %s30, %s49
      %s53 = ssub.s32 %s50, %s51
      %s54 = sor.u32 %s52, %s53
      %p55 = scmp.eq.s32.totalorder %s54, 0
      %s57 = sadd.s32 %s56, 1
      %s58 = scalar_select %p55, %s56, %s57
      %p61 = pneg %p55
      %p62 = scmp.eq.s32.totalorder %s23, 1
      %p63 = por %p61, %p62
      %p64 = scmp.ne.s32.totalorder %s56, %s59
      %p65 = scmp.eq.s32.totalorder %s23, 0
      %p66 = por %p64, %p65
      %p67 = scmp.ne.s32.totalorder %s56, %s59
      %p68 = scmp.eq.s32.totalorder %s28, 1
      %p69 = por %p67, %p68
      %p70 = scmp.ne.s32.totalorder %s59, %s60
      %p71 = scmp.eq.s32.totalorder %s28, 0
      %p72 = por %p70, %p71
      %p73 = scmp.ne.s32.totalorder %s59, %s60
      %p74 = scmp.eq.s32.totalorder %s29, 1
      %p75 = por %p73, %p74
      %p77 = scmp.ne.s32.totalorder %s60, %s76
      %p78 = scmp.eq.s32.totalorder %s29, 0
      %p79 = por %p77, %p78
      %s80 = sadd.s32 %s31, %s32
      %s81 = sadd.s32 %s45, %s41
      %s82 = ssub.s32 %s30, %s49
      %s83 = ssub.s32 %s80, %s81
      %s84 = sor.u32 %s82, %s83
      %p85 = scmp.eq.s32.totalorder %s84, 0
      %s87 = sadd.s32 %s86, 1
      %s88 = scalar_select %p85, %s86, %s87
      %p91 = pneg %p85
      %p92 = scmp.eq.s32.totalorder %s23, 1
      %p93 = por %p91, %p92
      %p94 = scmp.ne.s32.totalorder %s86, %s89
      %p95 = scmp.eq.s32.totalorder %s23, 0
      %p96 = por %p94, %p95
      %p97 = scmp.ne.s32.totalorder %s86, %s89
      %p98 = scmp.eq.s32.totalorder %s28, 1
      %p99 = por %p97, %p98
      %p100 = scmp.ne.s32.totalorder %s89, %s90
      %p101 = scmp.eq.s32.totalorder %s28, 0
      %p102 = por %p100, %p101
      %p103 = scmp.ne.s32.totalorder %s89, %s90
      %p104 = scmp.eq.s32.totalorder %s29, 1
      %p105 = por %p103, %p104
      %p107 = scmp.ne.s32.totalorder %s90, %s106
      %p108 = scmp.eq.s32.totalorder %s29, 0
      %p109 = por %p107, %p108
      %s110 = sadd.s32 %s31, %s32
      %s111 = sadd.s32 %s45, %s41
      %s112 = ssub.s32 %s30, %s49
      %s113 = ssub.s32 %s110, %s111
      %s114 = sor.u32 %s112, %s113
      %p115 = scmp.eq.s32.totalorder %s114, 0
      %s117 = sadd.s32 %s116, 1
      %s118 = scalar_select %p115, %s116, %s117
      %p121 = pneg %p115
      %p122 = scmp.eq.s32.totalorder %s23, 1
      %p123 = por %p121, %p122
      %p124 = scmp.ne.s32.totalorder %s116, %s119
      %p125 = scmp.eq.s32.totalorder %s23, 0
      %p126 = por %p124, %p125
      %p127 = scmp.ne.s32.totalorder %s116, %s119
      %p128 = scmp.eq.s32.totalorder %s28, 1
      %p129 = por %p127, %p128
      %p130 = scmp.ne.s32.totalorder %s119, %s120
      %p131 = scmp.eq.s32.totalorder %s28, 0
      %p132 = por %p130, %p131
      %p133 = scmp.ne.s32.totalorder %s119, %s120
      %p134 = scmp.eq.s32.totalorder %s29, 1
      %p135 = por %p133, %p134
      %p137 = scmp.ne.s32.totalorder %s120, %s136
      %p138 = scmp.eq.s32.totalorder %s29, 0
      %p139 = por %p137, %p138
      %s140 = ssub.s32 %s30, %s49
      %s141 = ssub.s32 %s31, %s45
      %s142 = sor.u32 %s140, %s141
      %p143 = scmp.eq.s32.totalorder %s142, 0
      %s145 = sadd.s32 %s144, 1
      %s146 = scalar_select %p143, %s144, %s145
      %p149 = pneg %p143
      %p150 = scmp.eq.s32.totalorder %s23, 1
      %p151 = por %p149, %p150
      %p152 = scmp.ne.s32.totalorder %s144, %s147
      %p153 = scmp.eq.s32.totalorder %s23, 0
      %p154 = por %p152, %p153
      %p155 = scmp.ne.s32.totalorder %s144, %s147
      %p156 = scmp.eq.s32.totalorder %s28, 1
      %p157 = por %p155, %p156
      %p158 = scmp.ne.s32.totalorder %s147, %s148
      %p159 = scmp.eq.s32.totalorder %s28, 0
      %p160 = por %p158, %p159
      %p161 = scmp.ne.s32.totalorder %s147, %s148
      %p162 = scmp.eq.s32.totalorder %s29, 1
      %p163 = por %p161, %p162
      %p165 = scmp.ne.s32.totalorder %s148, %s164
      %p166 = scmp.eq.s32.totalorder %s29, 0
      %p167 = por %p165, %p166
      %s168 = ssub.s32 %s30, %s49
      %s169 = ssub.s32 %s31, %s45
      %s170 = sor.u32 %s168, %s169
      %p171 = scmp.eq.s32.totalorder %s170, 0
      %s173 = sadd.s32 %s172, 1
      %s174 = scalar_select %p171, %s172, %s173
      %p177 = pneg %p171
      %p178 = scmp.eq.s32.totalorder %s23, 1
      %p179 = por %p177, %p178
      %p180 = scmp.ne.s32.totalorder %s172, %s175
      %p181 = scmp.eq.s32.totalorder %s23, 0
      %p182 = por %p180, %p181
      %p183 = scmp.ne.s32.totalorder %s172, %s175
      %p184 = scmp.eq.s32.totalorder %s28, 1
      %p185 = por %p183, %p184
      %p186 = scmp.ne.s32.totalorder %s175, %s176
      %p187 = scmp.eq.s32.totalorder %s28, 0
      %p188 = por %p186, %p187
      %p189 = scmp.ne.s32.totalorder %s175, %s176
      %p190 = scmp.eq.s32.totalorder %s29, 1
      %p191 = por %p189, %p190
      %p193 = scmp.ne.s32.totalorder %s176, %s192
      %p194 = scmp.eq.s32.totalorder %s29, 0
      %p195 = por %p193, %p194
      %p196 = scmp.le.s32.totalorder 1, %s23
      %p197 = scmp.lt.s32.totalorder %s23, 3
      %p198 = pnand %p196, %p197
      %p199 = pneg %p198
      // Predicated region
      $region9: #{tpu_custom_call.1} parent=5 // pred_check
        _
      $region10: #{tpu_custom_call.1} parent=5 // pred_check_branch
        %201 = sbr.rel (%p198) target = $region12
      $region11: #{tpu_custom_call.1} parent=5 // pred_region
        %s202 = ssub.s32 %s23, 1
      $region12: #{tpu_custom_call.1} parent=5 // pred_fallthru
        _
      %p203 = scmp.lt.s32.totalorder %s23, 2
      // Predicated region
      $region13: #{tpu_custom_call.1} parent=5 // pred_check
        %p204 = pneg %p203
      $region14: #{tpu_custom_call.1} parent=5 // pred_check_branch
        %206 = sbr.rel (%p204) target = $region16
      $region15: #{tpu_custom_call.1} parent=5 // pred_region
        // Predicated region
        $region17: #{tpu_custom_call.1} parent=15 // pred_check
          %p207 = pneg %p66
        $region18: #{tpu_custom_call.1} parent=15 // pred_check_branch
          %209 = sbr.rel (%p207) target = $region20
        $region19: #{tpu_custom_call.1} parent=15 // pred_region
          %s210 = sand.u32 %s56, 1
          %s211 = scalar_lea.sflag [#allocation3], %s210
          %s212 = sand.u32 %s56, 1
          %s213 = smul.addr %s212, 8
          %s214 = scalar_lea.vmem [#allocation2], %s213
          %s215 = sadd.s32 %s31, %s32
          %217 = vsyncadd %s211, 0
          %s218 = smul.addr %s30, 4
          %s219 = sadd.s32 %s215, %s218
          %s220 = smul.addr %s219, 2
          %s221 = scalar_lea.hbm %s0, %s220
          %s222 = sshll.u32 %s221, 4
          %s223 = int_to_ptr.hbm [resolvable:$true] %s222
          %s224 = sshll.u32 %s214, 4
          %s225 = int_to_ptr.vmem [resolvable:$true] %s224
          %230 = dma.hbm_to_vmem [thread:$0]  %s223, 128, %s225, %s211, 32, 32, 2
        $region20: #{tpu_custom_call.1} parent=15 // pred_fallthru
          _
        // Predicated region
        $region21: #{tpu_custom_call.1} parent=15 // pred_check
          %p231 = pneg %p96
        $region22: #{tpu_custom_call.1} parent=15 // pred_check_branch
          %233 = sbr.rel (%p231) target = $region24
        $region23: #{tpu_custom_call.1} parent=15 // pred_region
          %s234 = sand.u32 %s86, 1
          %s235 = scalar_lea.sflag [#allocation6], %s234
          %s236 = sand.u32 %s86, 1
          %s237 = smul.addr %s236, 2
          %s238 = scalar_lea.vmem [#allocation5], %s237
          %s239 = sadd.s32 %s31, %s32
          %241 = vsyncadd %s235, 0
          %s242 = sadd.s32 %s239, %s30
          %s243 = smul.addr %s242, 2
          %s244 = scalar_lea.hbm %s1, %s243
          %s246 = sshll.u32 %s244, 4
          %s247 = int_to_ptr.hbm [resolvable:$true] %s246
          %s248 = sshll.u32 %s238, 4
          %s249 = int_to_ptr.vmem [resolvable:$true] %s248
          %251 = dma.hbm_to_vmem [thread:$0]  %s247, 32, %s249, %s235
        $region24: #{tpu_custom_call.1} parent=15 // pred_fallthru
          _
      $region16: #{tpu_custom_call.1} parent=5 // pred_fallthru
        _
      %p252 = scmp.le.s32.totalorder 1, %s23
      %p253 = scmp.lt.s32.totalorder %s23, 3
      %p254 = pnand %p252, %p253
      %p255 = pneg %p254
      // Predicated region
      $region25: #{tpu_custom_call.1} parent=5 // pred_check
        _
      $region26: #{tpu_custom_call.1} parent=5 // pred_check_branch
        %257 = sbr.rel (%p254) target = $region28
      $region27: #{tpu_custom_call.1} parent=5 // pred_region
        %s258 = ssub.s32 %s23, 1
        %s259 = sand.u32 %s59, 1
        %s260 = scalar_lea.sflag [#allocation3], %s259
        %s261 = sand.u32 %s59, 1
        %s262 = smul.addr %s261, 8
        %s263 = scalar_lea.vmem [#allocation2], %s262
        // Predicated region
        $region29: #{tpu_custom_call.1} parent=27 // pred_check
          %p264 = pneg %p72
        $region30: #{tpu_custom_call.1} parent=27 // pred_check_branch
          %266 = sbr.rel (%p264) target = $region32
        $region31: #{tpu_custom_call.1} parent=27 // pred_region
          %268 = dma.done %s260, 128
        $region32: #{tpu_custom_call.1} parent=27 // pred_fallthru
          _
        %s269 = sand.u32 %s89, 1
        %s270 = scalar_lea.sflag [#allocation6], %s269
        %s271 = sand.u32 %s89, 1
        %s272 = smul.addr %s271, 2
        %s273 = scalar_lea.vmem [#allocation5], %s272
        // Predicated region
        $region33: #{tpu_custom_call.1} parent=27 // pred_check
          %p274 = pneg %p102
        $region34: #{tpu_custom_call.1} parent=27 // pred_check_branch
          %276 = sbr.rel (%p274) target = $region36
        $region35: #{tpu_custom_call.1} parent=27 // pred_region
          %278 = dma.done %s270, 32
        $region36: #{tpu_custom_call.1} parent=27 // pred_fallthru
          _
        %s279 = sand.u32 %s59, 1
        %s280 = scalar_lea.sflag [#allocation3], %s279
        %s281 = sand.u32 %s59, 1
        %s282 = smul.addr %s281, 8
        %s283 = scalar_lea.vmem [#allocation2], %s282
        %p284 = pneg %p72
        %p285 = pneg %p69
        %s286 = sand.u32 %s89, 1
        %s287 = scalar_lea.sflag [#allocation6], %s286
        %s288 = sand.u32 %s89, 1
        %s289 = smul.addr %s288, 2
        %s290 = scalar_lea.vmem [#allocation5], %s289
        %p291 = pneg %p102
        %p292 = pneg %p99
        %p293 = pneg %p132
        %p294 = pneg %p129
        %s295 = sand.u32 %s119, 1
        %s296 = scalar_lea.sflag [#allocation4], %s295
        %s297 = sand.u32 %s119, 1
        %s298 = smul.addr %s297, 2
        %s299 = scalar_lea.vmem [#allocation7], %s298
        %p300 = pneg %p160
        %p301 = pneg %p157
        %s302 = sand.u32 %s28, 1
        %s303 = scalar_lea.sflag [#allocation9], %s302
        %s304 = sand.u32 %s147, 1
        %s305 = smul.addr %s304, 2
        %s306 = scalar_lea.vmem [#allocation8], %s305
        %p307 = pneg %p188
        %p308 = pneg %p185
        %s309 = sand.u32 %s28, 1
        %s310 = scalar_lea.sflag [#allocation9], %s309
        %s311 = sand.u32 %s175, 1
        %s312 = smul.addr %s311, 2
        %s313 = scalar_lea.vmem [#allocation10], %s312
        %s314 = sadd.s32 %s34, %s35
        %s315 = sadd.s32 %s34, %s35
        %s316 = sadd.s32 %s34, %s35
        %v317 = vld [vmem:[%s273] sm:$0x3]
        %vm318 = vcmp.ne.s32.totalorder %v317, 255
        %v319 = vld [vmem:[%s263] sm:$0x3]
        %vm320 = vcmp.eq.s32.totalorder %v317, 0
        %v321 = vsel %vm320, %v319, 0.0
        %s322 = scalar_lea.vmem %s263, 2 [#allocation2]
        %v323 = vld [vmem:[%s322] sm:$0x3]
        %v324 = vmax.f32 %v319, %v323
        %vm325 = vcmp.eq.s32.totalorder %v317, 1
        %v326 = vsel %vm325, %v323, %v321
        %s327 = scalar_lea.vmem %s263, 4 [#allocation2]
        %v328 = vld [vmem:[%s327] sm:$0x3]
        %v329 = vmax.f32 %v324, %v328
        %vm330 = vcmp.eq.s32.totalorder %v317, 2
        %v331 = vsel %vm330, %v328, %v326
        %s332 = scalar_lea.vmem %s263, 6 [#allocation2]
        %v333 = vld [vmem:[%s332] sm:$0x3]
        %v334 = vmax.f32 %v329, %v333
        %vm335 = vcmp.eq.s32.totalorder %v317, 3
        %v336 = vsel %vm335, %v333, %v331
        %v337 = vsub.f32 %v319, %v334
        %v338 = vmul.f32 %v337, 1.442695
        %v339 = vpow.pop %v338
        %v340 = vadd.f32 %v339, 0.0
        %v341 = vsub.f32 %v323, %v334
        %v342 = vmul.f32 %v341, 1.442695
        %v343 = vpow.pop %v342
        %v344 = vadd.f32 %v340, %v343
        %v345 = vsub.f32 %v328, %v334
        %v346 = vmul.f32 %v345, 1.442695
        %v347 = vpow.pop %v346
        %v348 = vadd.f32 %v344, %v347
        %v349 = vsub.f32 %v333, %v334
        %v350 = vmul.f32 %v349, 1.442695
        %v351 = vpow.pop %v350
        %v352 = vadd.f32 %v348, %v351
        %v353 = vlog2.pop %v352
        %v354 = vmul.f32 %v353, 0.6931472
        %v355 = vadd.f32 %v354, %v334
        %v356 = vsub.f32 %v355, %v336
        %v357 = vsel %vm318, %v356, 0.0
        %358 = vst [vmem:[%s299] sm:$0x3] %v357
        %vm359 = vcmp.gt.f32.partialorder %v357, 0.35667494
        %v360 = vsel %vm359, %v357, 0.0
        %v361 = vsel %vm359, 1, 0
        %v362 = vcvt.s32.f32 %v361
        %p363 = scmp.eq.s32.totalorder %s35, 0
        // Predicated region
        $region37: #{tpu_custom_call.1} parent=27 // pred_check
          %p364 = pneg %p363
        $region38: #{tpu_custom_call.1} parent=27 // pred_check_branch
          %366 = sbr.rel (%p364) target = $region40
        $region39: #{tpu_custom_call.1} parent=27 // pred_region
          %367 = vst [vmem:[%s306] sm:$0x3] 0.0
          %368 = vst [vmem:[%s313] sm:$0x3] 0.0
        $region40: #{tpu_custom_call.1} parent=27 // pred_fallthru
          _
        %v369 = vld [vmem:[%s306] sm:$0x3]
        %v370 = vadd.f32 %v369, %v360
        %371 = vst [vmem:[%s306] sm:$0x3] %v370
        %v372 = vld [vmem:[%s313] sm:$0x3]
        %v373 = vadd.f32 %v372, %v362
        %374 = vst [vmem:[%s313] sm:$0x3] %v373
        %s375 = sand.u32 %s119, 1
        %s376 = scalar_lea.sflag [#allocation4], %s375
        %s377 = sand.u32 %s119, 1
        %s378 = smul.addr %s377, 2
        %s379 = scalar_lea.vmem [#allocation7], %s378
        %s380 = sand.u32 %s28, 1
        %s381 = scalar_lea.sflag [#allocation9], %s380
        %s382 = sand.u32 %s147, 1
        %s383 = smul.addr %s382, 2
        %s384 = scalar_lea.vmem [#allocation8], %s383
        %s385 = sand.u32 %s28, 1
        %s386 = scalar_lea.sflag [#allocation9], %s385
        %s387 = sand.u32 %s175, 1
        %s388 = smul.addr %s387, 2
        %s389 = scalar_lea.vmem [#allocation10], %s388
        // Predicated region
        $region41: #{tpu_custom_call.1} parent=27 // pred_check
          %p390 = pneg %p129
        $region42: #{tpu_custom_call.1} parent=27 // pred_check_branch
          %392 = sbr.rel (%p390) target = $region44
        $region43: #{tpu_custom_call.1} parent=27 // pred_region
          %s393 = sadd.s32 %s34, %s35
          %395 = vsyncadd %s376, 0
          %s396 = sadd.s32 %s393, %s33
          %s397 = smul.addr %s396, 2
          %s398 = scalar_lea.hbm %s2, %s397
          %s400 = sshll.u32 %s379, 4
          %s401 = int_to_ptr.vmem [resolvable:$true] %s400
          %s402 = sshll.u32 %s398, 4
          %s403 = int_to_ptr.hbm [resolvable:$true] %s402
          %405 = dma.vmem_to_hbm [thread:$0]  %s401, 32, %s403, %s376
        $region44: #{tpu_custom_call.1} parent=27 // pred_fallthru
          _
        // Predicated region
        $region45: #{tpu_custom_call.1} parent=27 // pred_check
          %p406 = pneg %p157
        $region46: #{tpu_custom_call.1} parent=27 // pred_check_branch
          %408 = sbr.rel (%p406) target = $region48
        $region47: #{tpu_custom_call.1} parent=27 // pred_region
          %410 = vsyncadd %s381, 0
          %s411 = sadd.s32 %s34, %s33
          %s412 = smul.addr %s411, 2
          %s413 = scalar_lea.hbm %s3, %s412
          %s415 = sshll.u32 %s384, 4
          %s416 = int_to_ptr.vmem [resolvable:$true] %s415
          %s417 = sshll.u32 %s413, 4
          %s418 = int_to_ptr.hbm [resolvable:$true] %s417
          %420 = dma.vmem_to_hbm [thread:$0]  %s416, 32, %s418, %s381
        $region48: #{tpu_custom_call.1} parent=27 // pred_fallthru
          _
        // Predicated region
        $region49: #{tpu_custom_call.1} parent=27 // pred_check
          %p421 = pneg %p185
        $region50: #{tpu_custom_call.1} parent=27 // pred_check_branch
          %423 = sbr.rel (%p421) target = $region52
        $region51: #{tpu_custom_call.1} parent=27 // pred_region
          %425 = vsyncadd %s386, 0
          %s426 = sadd.s32 %s34, %s33
          %s427 = smul.addr %s426, 2
          %s428 = scalar_lea.hbm %s4, %s427
          %s430 = sshll.u32 %s389, 4
          %s431 = int_to_ptr.vmem [resolvable:$true] %s430
          %s432 = sshll.u32 %s428, 4
          %s433 = int_to_ptr.hbm [resolvable:$true] %s432
          %435 = dma.vmem_to_hbm [thread:$0]  %s431, 32, %s433, %s386
        $region52: #{tpu_custom_call.1} parent=27 // pred_fallthru
          _
      $region28: #{tpu_custom_call.1} parent=5 // pred_fallthru
        _
      %p436 = scmp.le.s32.totalorder 2, %s23
      // Predicated region
      $region53: #{tpu_custom_call.1} parent=5 // pred_check
        %p437 = pneg %p436
      $region54: #{tpu_custom_call.1} parent=5 // pred_check_branch
        %439 = sbr.rel (%p437) target = $region56
      $region55: #{tpu_custom_call.1} parent=5 // pred_region
        %s440 = ssub.s32 %s23, 2
        // Predicated region
        $region57: #{tpu_custom_call.1} parent=55 // pred_check
          %p441 = pneg %p135
        $region58: #{tpu_custom_call.1} parent=55 // pred_check_branch
          %443 = sbr.rel (%p441) target = $region60
        $region59: #{tpu_custom_call.1} parent=55 // pred_region
          %s444 = sand.u32 %s120, 1
          %s445 = scalar_lea.sflag [#allocation4], %s444
          %s446 = sand.u32 %s120, 1
          %s447 = smul.addr %s446, 2
          %s448 = scalar_lea.vmem [#allocation7], %s447
          %450 = dma.done %s445, 32
        $region60: #{tpu_custom_call.1} parent=55 // pred_fallthru
          _
        // Predicated region
        $region61: #{tpu_custom_call.1} parent=55 // pred_check
          %p451 = pneg %p163
        $region62: #{tpu_custom_call.1} parent=55 // pred_check_branch
          %453 = sbr.rel (%p451) target = $region64
        $region63: #{tpu_custom_call.1} parent=55 // pred_region
          %s454 = sand.u32 %s29, 1
          %s455 = scalar_lea.sflag [#allocation9], %s454
          %s456 = sand.u32 %s148, 1
          %s457 = smul.addr %s456, 2
          %s458 = scalar_lea.vmem [#allocation8], %s457
          %460 = dma.done %s455, 32
        $region64: #{tpu_custom_call.1} parent=55 // pred_fallthru
          _
        // Predicated region
        $region65: #{tpu_custom_call.1} parent=55 // pred_check
          %p461 = pneg %p191
        $region66: #{tpu_custom_call.1} parent=55 // pred_check_branch
          %463 = sbr.rel (%p461) target = $region68
        $region67: #{tpu_custom_call.1} parent=55 // pred_region
          %s464 = sand.u32 %s29, 1
          %s465 = scalar_lea.sflag [#allocation9], %s464
          %s466 = sand.u32 %s176, 1
          %s467 = smul.addr %s466, 2
          %s468 = scalar_lea.vmem [#allocation10], %s467
          %470 = dma.done %s465, 32
        $region68: #{tpu_custom_call.1} parent=55 // pred_fallthru
          _
      $region56: #{tpu_custom_call.1} parent=5 // pred_fallthru
        _
    $region6: #{tpu_custom_call.1} parent=1 // loop_footer
      %s27 = sadd.s32 1, %s23
    $region7: #{tpu_custom_call.1} parent=1 // loop_footer_branch
      %22 = sbr.rel target = $region3
    $region8: #{tpu_custom_call.1} parent=1 // loop_exit
      _
    %471 = vsyncpa [#allocation3], 1
    %s472 = scalar_lea.sflag [#allocation3], 1
    %473 = vsyncpa %s472, 1
    %474 = vsyncpa [#allocation6], 1
    %s475 = scalar_lea.sflag [#allocation6], 1
    %476 = vsyncpa %s475, 1
    %477 = vsyncpa [#allocation4], 1
    %s478 = scalar_lea.sflag [#allocation4], 1
    %479 = vsyncpa %s478, 1
    %480 = vsyncpa [#allocation9], 1
    %s481 = scalar_lea.sflag [#allocation9], 1
    %482 = vsyncpa %s481, 1

</llo_original>
